<compile_context>
chip_gen: v7x
topology: tpu7x:2x2x1
jax: 0.10.0
libtpu: 0.0.40
codegen_flags: <defaults>
</compile_context>

<pallas_src>
import numpy as np
import jax
import jax.numpy as jnp
from jax.experimental import pallas as pl
from jax.experimental.pallas import tpu as pltpu


def _round_up(x, m):
    return ((x + m - 1) // m) * m


def _vmem_limit(need_bytes):
    """Scoped-VMEM limit: lift the small defaults, stay under physical VMEM."""
    phys = 64 << 20                      # conservative fallback (v7x-class)
    try:
        info = pltpu.get_tpu_info()
        phys = int(getattr(info, "vmem_capacity_bytes", phys))
    except Exception:
        pass
    if phys >= (96 << 20):               # 128 MiB parts (v5e/v6e)
        cap = 100 << 20
    else:                                # 64 MiB parts (v7x): leave headroom
        cap = max(phys - (12 << 20), 24 << 20)
    return int(min(max(need_bytes + (8 << 20), 32 << 20), cap))


# ---------------------------------------------------------------------------
# Phase 1: batched input projection   proj = X @ [Wx | Wp] + [bx+bl+br | bp]
# ---------------------------------------------------------------------------
def _input_proj_kernel(x_ref, w_ref, b_ref, o_ref):
    x = x_ref[...].astype(w_ref.dtype)
    o_ref[...] = (jnp.dot(x, w_ref[...], preferred_element_type=jnp.float32)
                  + b_ref[...])


# ---------------------------------------------------------------------------
# Phase 2: wavefront (level) recursion over LBLK-row chunks
# ---------------------------------------------------------------------------
def _tree_wavefront_kernel(left_ref, right_ref, size_ref, flag_ref,   # SMEM prefetch
                           proj_ref, wlr_ref,                         # VMEM inputs
                           state_ref,                                 # VMEM out (whole, resident)
                           lstate, rstate):                           # VMEM scratch
    hp = wlr_ref.shape[0] // 2
    lblk = lstate.shape[0]
    sentinel = state_ref.shape[0] - 1        # last row: always-zero "no child"
    cid = pl.program_id(0)

    @pl.when(cid == 0)
    def _():
        state_ref[sentinel:sentinel + 1, :] = jnp.zeros((1, 2 * hp), jnp.float32)

    flag = flag_ref[cid]                     # 0 => leaf-level chunk, 1 => internal

    @pl.when(flag == 0)
    def _():
        # Leaves: no children.  Zero the child-state scratches; the recurrent
        # matmul then contributes exactly zero (leaf precompute path).
        lstate[...] = jnp.zeros_like(lstate)
        rstate[...] = jnp.zeros_like(rstate)

    @pl.when(flag > 0)
    def _():
        base = cid * lblk
        nvalid = size_ref[cid]

        def gather(j, carry):
            li = left_ref[base + j]          # padded / missing children -> sentinel
            ri = right_ref[base + j]
            lstate[pl.ds(j, 1), :] = state_ref[pl.ds(li, 1), :]
            rstate[pl.ds(j, 1), :] = state_ref[pl.ds(ri, 1), :]
            return carry

        @pl.when(nvalid == lblk)             # common case: full chunk, unrolled
        def _():
            jax.lax.fori_loop(0, lblk, gather, 0, unroll=4)

        @pl.when(nvalid < lblk)              # ragged tail chunk: exact dynamic bound
        def _():
            jax.lax.fori_loop(0, nvalid, gather, 0)

    # One batched recurrent matmul for the whole chunk: [left_h | right_h] @ [Wl ; Wr]
    hh = jnp.concatenate([lstate[:, hp:], rstate[:, hp:]], axis=1)     # (LBLK, 2hp)
    rec = jnp.dot(hh.astype(wlr_ref.dtype), wlr_ref[...],
                  preferred_element_type=jnp.float32)                  # (LBLK, 6hp)

    row = proj_ref[...]                                                # (LBLK, 7hp)
    ioffu = row[:, :6 * hp] + rec
    px = row[:, 6 * hp:]

    i_g = jax.nn.sigmoid(ioffu[:, 0 * hp:1 * hp])
    o_g = jax.nn.sigmoid(ioffu[:, 1 * hp:2 * hp])
    f_l = jax.nn.sigmoid(ioffu[:, 2 * hp:3 * hp])
    f_r = jax.nn.sigmoid(ioffu[:, 3 * hp:4 * hp])
    u_g = jnp.tanh(ioffu[:, 4 * hp:5 * hp])
    r_g = jax.nn.sigmoid(ioffu[:, 5 * hp:6 * hp])

    c_new = i_g * u_g + f_l * lstate[:, :hp] + f_r * rstate[:, :hp]
    h_new = o_g * jnp.tanh(c_new)
    h_fin = r_g * h_new + (1.0 - r_g) * px

    # One lane-dense, LBLK-aligned slab store per chunk.
    start = pl.multiple_of(cid * lblk, lblk)
    state_ref[pl.ds(start, lblk), :] = jnp.concatenate([c_new, h_fin], axis=1)


# ---------------------------------------------------------------------------
# Host-side wavefront planning (metadata only; trees live on the host anyway)
# ---------------------------------------------------------------------------
def _plan_levels(left_np, right_np, lblk_cap=128):
    n = int(left_np.shape[0])
    assert n >= 1
    level = np.zeros(n, np.int64)
    for t in range(n):
        l, r = int(left_np[t]), int(right_np[t])
        assert l < t and r < t, "nodes must be post-ordered (children before parents)"
        lv = 0
        if l >= 0:
            lv = max(lv, int(level[l]) + 1)
        if r >= 0:
            lv = max(lv, int(level[r]) + 1)
        level[t] = lv
    n_levels = int(level.max()) + 1
    max_level = int(np.max(np.bincount(level)))
    lblk = int(min(lblk_cap, _round_up(max_level, 8)))

    slot_of_node = np.zeros(n, np.int64)
    chunk_nodes, chunk_level = [], []
    for lv in range(n_levels):
        nodes = np.nonzero(level == lv)[0]
        for s in range(0, len(nodes), lblk):
            grp = nodes[s:s + lblk]
            base = len(chunk_nodes) * lblk
            slot_of_node[grp] = base + np.arange(len(grp))
            chunk_nodes.append(grp)
            chunk_level.append(lv)

    num_chunks = len(chunk_nodes)
    ncp = num_chunks * lblk
    sentinel = ncp
    left_rows = np.full(ncp, sentinel, np.int32)
    right_rows = np.full(ncp, sentinel, np.int32)
    sizes = np.zeros(num_chunks, np.int32)
    flags = np.zeros(num_chunks, np.int32)
    feat_src = np.zeros(ncp, np.int64)
    slot_valid = np.zeros(ncp, np.float32)
    for ci, grp in enumerate(chunk_nodes):
        base = ci * lblk
        k = len(grp)
        sizes[ci] = k
        flags[ci] = 1 if chunk_level[ci] > 0 else 0
        feat_src[base:base + k] = grp
        slot_valid[base:base + k] = 1.0
        lc = left_np[grp].astype(np.int64)
        rc = right_np[grp].astype(np.int64)
        left_rows[base:base + k] = np.where(
            lc >= 0, slot_of_node[np.maximum(lc, 0)], sentinel).astype(np.int32)
        right_rows[base:base + k] = np.where(
            rc >= 0, slot_of_node[np.maximum(rc, 0)], sentinel).astype(np.int32)

    return dict(lblk=lblk, num_chunks=num_chunks, ncp=ncp,
                left_rows=left_rows, right_rows=right_rows,
                sizes=sizes, flags=flags,
                feat_src=feat_src.astype(np.int32),
                slot_valid=slot_valid,
                slot_of_node=slot_of_node.astype(np.int32))


# ---------------------------------------------------------------------------
# Host wrapper
# ---------------------------------------------------------------------------
def bitree_lstm_forward(features, left_idx, right_idx, params,
                        matmul_dtype=jnp.bfloat16, lblk_cap=128):
    """features: [N, feat_dim] f32; left_idx/right_idx: [N] int32 (-1 => no child).

    Nodes must be post-ordered (children before parents).  Returns (c, h),
    each [N, h_dim] in node-processing (post) order.  matmul_dtype=bfloat16 is
    the default (MXU-native on v5e/v6e/v7x); gate math stays f32.
    """
    n, feat_dim = features.shape
    h_dim = params["wp"].shape[1]
    hp = _round_up(h_dim, 128)
    fp = _round_up(feat_dim, 128)
    fbytes = 4
    wbytes = jnp.dtype(matmul_dtype).itemsize

    # --- pad each of the 6 gate blocks to a lane-aligned hp-wide slot --------
    def pad_gates_cols(w):                              # (in, 6*h) -> (in, 6*hp)
        out = jnp.zeros((w.shape[0], 6 * hp), jnp.float32)
        for g in range(6):
            out = out.at[:, g * hp:g * hp + h_dim].set(
                w[:, g * h_dim:(g + 1) * h_dim])
        return out

    wx_p = jnp.zeros((fp, 6 * hp), jnp.float32).at[:feat_dim, :].set(
        pad_gates_cols(params["wx"]))
    wp_p = jnp.zeros((fp, hp), jnp.float32).at[:feat_dim, :h_dim].set(params["wp"])
    w_all = jnp.concatenate([wx_p, wp_p], axis=1).astype(matmul_dtype)   # (fp, 7hp)

    b_all = jnp.concatenate(
        [pad_gates_cols(params["b_ioffu"]),
         jnp.zeros((1, hp), jnp.float32).at[:, :h_dim].set(params["bp"])],
        axis=1)                                                           # (1, 7hp)

    wl_p = jnp.zeros((hp, 6 * hp), jnp.float32).at[:h_dim, :].set(
        pad_gates_cols(params["wl"]))
    wr_p = jnp.zeros((hp, 6 * hp), jnp.float32).at[:h_dim, :].set(
        pad_gates_cols(params["wr"]))
    wlr = jnp.concatenate([wl_p, wr_p], axis=0).astype(matmul_dtype)      # (2hp, 6hp)

    # --- host-side wavefront plan --------------------------------------------
    plan = _plan_levels(np.asarray(left_idx), np.asarray(right_idx), lblk_cap)
    lblk = plan["lblk"]
    num_chunks = plan["num_chunks"]
    ncp = plan["ncp"]

    # Features in chunk-slot order (padded slots zeroed).
    src = jnp.asarray(plan["feat_src"])
    mask = jnp.asarray(plan["slot_valid"])[:, None]
    x_sel = jnp.take(features, src, axis=0) * mask                        # (ncp, feat)

    # --- phase 1: batched projection over all (slotted) nodes ----------------
    tm = ncp if ncp <= 1024 else 512
    ncp_pad = _round_up(ncp, tm)
    x_pad = jnp.zeros((ncp_pad, fp), matmul_dtype).at[:ncp, :feat_dim].set(
        x_sel.astype(matmul_dtype))

    proj_need = (2 * tm * fp * wbytes + 2 * fp * 7 * hp * wbytes
                 + 2 * 7 * hp * fbytes + 2 * tm * 7 * hp * fbytes)
    proj_full = pl.pallas_call(
        _input_proj_kernel,
        out_shape=jax.ShapeDtypeStruct((ncp_pad, 7 * hp), jnp.float32),
        grid_spec=pltpu.PrefetchScalarGridSpec(
            num_scalar_prefetch=0,
            grid=(ncp_pad // tm,),
            in_specs=[
                pl.BlockSpec((tm, fp), lambda i: (i, 0)),        # X rows (streamed, bf16)
                pl.BlockSpec((fp, 7 * hp), lambda i: (0, 0)),    # fused [Wx | Wp]
                pl.BlockSpec((1, 7 * hp), lambda i: (0, 0)),     # fused bias
            ],
            out_specs=pl.BlockSpec((tm, 7 * hp), lambda i: (i, 0)),
        ),
        compiler_params=pltpu.CompilerParams(
            dimension_semantics=("parallel",),
            vmem_limit_bytes=_vmem_limit(proj_need)),
    )(x_pad, w_all, b_all)
    proj = proj_full[:ncp] if ncp_pad != ncp else proj_full

    # --- phase 2: wavefront recursion over level-ordered chunks --------------
    left_rows = jnp.asarray(plan["left_rows"])
    right_rows = jnp.asarray(plan["right_rows"])
    sizes = jnp.asarray(plan["sizes"])
    flags = jnp.asarray(plan["flags"])

    serial_need = (2 * (ncp + 1) * 2 * hp * fbytes        # resident [c|h] state
                   + 2 * lblk * 7 * hp * fbytes           # streamed proj block
                   + 2 * 2 * hp * 6 * hp * wbytes         # fused [Wl ; Wr]
                   + 2 * lblk * 2 * hp * fbytes)          # gather scratches

    state = pl.pallas_call(
        _tree_wavefront_kernel,
        out_shape=jax.ShapeDtypeStruct((ncp + 1, 2 * hp), jnp.float32),
        grid_spec=pltpu.PrefetchScalarGridSpec(
            num_scalar_prefetch=4,
            grid=(num_chunks,),
            in_specs=[
                pl.BlockSpec((lblk, 7 * hp), lambda c, lr, rr, sz, fl: (c, 0)),
                pl.BlockSpec((2 * hp, 6 * hp), lambda c, lr, rr, sz, fl: (0, 0)),
            ],
            out_specs=pl.BlockSpec((ncp + 1, 2 * hp),
                                   lambda c, lr, rr, sz, fl: (0, 0)),
            scratch_shapes=[pltpu.VMEM((lblk, 2 * hp), jnp.float32),
                            pltpu.VMEM((lblk, 2 * hp), jnp.float32)],
        ),
        compiler_params=pltpu.CompilerParams(
            dimension_semantics=("arbitrary",),           # levels are sequential
            vmem_limit_bytes=_vmem_limit(serial_need)),
    )(left_rows, right_rows, sizes, flags, proj, wlr)

    # --- back to node-processing (post) order ---------------------------------
    slot = jnp.asarray(plan["slot_of_node"])
    rows = jnp.take(state, slot, axis=0)                   # (n, 2hp)
    c_out = rows[:, :h_dim]
    h_out = rows[:, hp:hp + h_dim]
    return c_out, h_out


# ---------------------------------------------------------------------------
# Params + pure-JAX reference
# ---------------------------------------------------------------------------
def make_params(key, feat_dim, h_dim):
    k1, k2, k3, k4 = jax.random.split(key, 4)
    scale = 0.1
    # Deterministic synthetic init (block_orthogonal in torch); stored transposed.
    wp = scale * jax.random.normal(k1, (feat_dim, h_dim), jnp.float32)
    wx = scale * jax.random.normal(k2, (feat_dim, 6 * h_dim), jnp.float32)
    wl = scale * jax.random.normal(k3, (h_dim, 6 * h_dim), jnp.float32)
    wr = scale * jax.random.normal(k4, (h_dim, 6 * h_dim), jnp.float32)
    bp = jnp.zeros((1, h_dim), jnp.float32)
    # bx = 0; bl, br = 0 except slots [2h:4h] = 0.5 each -> combined bias = 1.0 there.
    b = jnp.zeros((6 * h_dim,), jnp.float32).at[2 * h_dim:4 * h_dim].set(1.0)
    return {"wp": wp, "bp": bp, "wx": wx, "wl": wl, "wr": wr,
            "b_ioffu": b.reshape(1, -1)}


def reference_forward(features, left_idx, right_idx, params):
    """Sequential pure-JAX reference of node_forward over the post-ordered tree."""
    n = features.shape[0]
    h_dim = params["wp"].shape[1]
    c_all = jnp.zeros((n, h_dim), jnp.float32)
    h_all = jnp.zeros((n, h_dim), jnp.float32)
    for t in range(n):
        li = int(left_idx[t]); ri = int(right_idx[t])
        lc = c_all[li] if li >= 0 else jnp.zeros((h_dim,), jnp.float32)
        lh = h_all[li] if li >= 0 else jnp.zeros((h_dim,), jnp.float32)
        rc = c_all[ri] if ri >= 0 else jnp.zeros((h_dim,), jnp.float32)
        rh = h_all[ri] if ri >= 0 else jnp.zeros((h_dim,), jnp.float32)
        x = features[t]
        px = x @ params["wp"] + params["bp"][0]
        ioffu = (x @ params["wx"] + lh @ params["wl"] + rh @ params["wr"]
                 + params["b_ioffu"][0])
        i_g, o_g, f_l, f_r, u_g, r_g = jnp.split(ioffu, 6)
        i_g, o_g, f_l, f_r = map(jax.nn.sigmoid, (i_g, o_g, f_l, f_r))
        u_g = jnp.tanh(u_g)
        r_g = jax.nn.sigmoid(r_g)
        c = i_g * u_g + f_l * lc + f_r * rc
        h = o_g * jnp.tanh(c)
        h_final = r_g * h + (1.0 - r_g) * px
        c_all = c_all.at[t].set(c)
        h_all = h_all.at[t].set(h_final)
    return c_all, h_all


if __name__ == "__main__":
    feat_dim, h_dim = 16, 32

    # Complete binary tree of depth 3 (15 nodes) in post-order, plus one extra
    # unary root (left child only) to exercise the missing-child path.
    left_list, right_list = [], []

    def build(d):
        if d == 0:
            left_list.append(-1)
            right_list.append(-1)
        else:
            build(d - 1)
            l = len(left_list) - 1
            build(d - 1)
            r = len(left_list) - 1
            left_list.append(l)
            right_list.append(r)

    build(3)
    left_list.append(len(left_list) - 1)   # unary root on top
    right_list.append(-1)

    left_idx = jnp.array(left_list, jnp.int32)
    right_idx = jnp.array(right_list, jnp.int32)
    num_nodes = int(left_idx.shape[0])

    key = jax.random.PRNGKey(0)
    kfeat, kparam = jax.random.split(key)
    features = jax.random.normal(kfeat, (num_nodes, feat_dim), jnp.float32)
    params = make_params(kparam, feat_dim, h_dim)

    # Default (bf16 matmuls) path.
    c_bf, h_bf = bitree_lstm_forward(features, left_idx, right_idx, params)
    jax.block_until_ready((c_bf, h_bf))

    # f32 matmul path for tight numerical validation.
    c_f32, h_f32 = bitree_lstm_forward(features, left_idx, right_idx, params,
                                       matmul_dtype=jnp.float32)
    jax.block_until_ready((c_f32, h_f32))

    c_ref, h_ref = reference_forward(features, left_idx, right_idx, params)

    assert jnp.allclose(c_f32, c_ref, atol=1e-4, rtol=1e-4), \
        float(jnp.max(jnp.abs(c_f32 - c_ref)))
    assert jnp.allclose(h_f32, h_ref, atol=1e-4, rtol=1e-4), \
        float(jnp.max(jnp.abs(h_f32 - h_ref)))
    assert jnp.allclose(c_bf, c_ref, atol=8e-2, rtol=8e-2), \
        float(jnp.max(jnp.abs(c_bf - c_ref)))
    assert jnp.allclose(h_bf, h_ref, atol=8e-2, rtol=8e-2), \
        float(jnp.max(jnp.abs(h_bf - h_ref)))

    print("KERNEL_OK")
</pallas_src>

<mosaic_0001>
module attributes {stable_mosaic.version = 11 : i64} {
  func.func @_input_proj_kernel(%arg0: i32, %arg1: memref<40x128xbf16, #tpu.memory_space<vmem>>, %arg2: memref<128x896xbf16, #tpu.memory_space<vmem>>, %arg3: memref<1x896xf32, #tpu.memory_space<vmem>>, %arg4: memref<40x896xf32, #tpu.memory_space<vmem>>) attributes {dimension_semantics = [#tpu.dimension_semantics<parallel>], iteration_bounds = array<i64: 1>, scalar_prefetch = 0 : i64, scratch_operands = 0 : i64, tpu.core_type = #tpu.core_type<tc>, window_params = [{transform_indices = @transform_0, window_bounds = array<i64: 40, 128>}, {pipeline_mode = #tpu.pipeline_mode<synchronous>, transform_indices = @transform_1, window_bounds = array<i64: 128, 896>}, {pipeline_mode = #tpu.pipeline_mode<synchronous>, transform_indices = @transform_2, window_bounds = array<i64: 1, 896>}, {transform_indices = @transform_3, window_bounds = array<i64: 40, 896>}]} {
    %c0 = arith.constant 0 : index
    %c0_0 = arith.constant 0 : index
    %0 = vector.load %arg1[%c0, %c0_0] : memref<40x128xbf16, #tpu.memory_space<vmem>>, vector<40x128xbf16>
    %c0_1 = arith.constant 0 : index
    %c0_2 = arith.constant 0 : index
    %1 = vector.load %arg2[%c0_1, %c0_2] : memref<128x896xbf16, #tpu.memory_space<vmem>>, vector<128x896xbf16>
    %cst = arith.constant dense<0.000000e+00> : vector<40x896xf32>
    %2 = tpu.matmul %0, %1, %cst {dimension_numbers = #tpu.dot_dimension_numbers<[1], [0], [0], [1], [0, 0, 1, 1], [], []>} : vector<40x128xbf16>, vector<128x896xbf16>, vector<40x896xf32> -> vector<40x896xf32>
    %c0_3 = arith.constant 0 : index
    %c0_4 = arith.constant 0 : index
    %3 = vector.load %arg3[%c0_3, %c0_4] : memref<1x896xf32, #tpu.memory_space<vmem>>, vector<1x896xf32>
    %4 = vector.broadcast %3 : vector<1x896xf32> to vector<40x896xf32>
    %5 = arith.addf %2, %4 : vector<40x896xf32>
    %c0_5 = arith.constant 0 : index
    %c0_6 = arith.constant 0 : index
    %6 = vector.load %arg4[%c0_5, %c0_6] : memref<40x896xf32, #tpu.memory_space<vmem>>, vector<40x896xf32>
    tpu.vector_store %arg4[%c0_5, %c0_6], %5 {strides = array<i32>} : memref<40x896xf32, #tpu.memory_space<vmem>>, vector<40x896xf32>,
    return
  }
  func.func @transform_0(%arg0: i32) -> (i32, i32) {
    %c0_i32 = arith.constant 0 : i32
    %c0_i32_0 = arith.constant 0 : i32
    return %arg0, %c0_i32 : i32, i32
  }
  func.func @transform_1(%arg0: i32) -> (i32, i32) {
    %c0_i32 = arith.constant 0 : i32
    %c0_i32_0 = arith.constant 0 : i32
    %c0_i32_1 = arith.constant 0 : i32
    return %c0_i32, %c0_i32_0 : i32, i32
  }
  func.func @transform_2(%arg0: i32) -> (i32, i32) {
    %c0_i32 = arith.constant 0 : i32
    %c0_i32_0 = arith.constant 0 : i32
    %c0_i32_1 = arith.constant 0 : i32
    return %c0_i32, %c0_i32_0 : i32, i32
  }
  func.func @transform_3(%arg0: i32) -> (i32, i32) {
    %c0_i32 = arith.constant 0 : i32
    %c0_i32_0 = arith.constant 0 : i32
    return %arg0, %c0_i32 : i32, i32
  }
}

</mosaic_0001>

<llo_original>
// kernel: tpu_custom_call.1
$region0: #{tpu_custom_call.1}
  #allocation0 [shape = 'u32[]', space=smem, size = 0x4, offset = 0x4, fixed_abs, tag = 'smem constant byte address 0x4 - core index']
  #allocation1 [shape = 'u32[144,128]{1,0:T(1,128)}', space=vmem, size = 0x12000, scoped, tag = 'internal scratch']
  %s0 = inlined_call_operand.hbm [shape: bf16[40,128], index: 0, kind: input, shape index: {}]
  %s1 = inlined_call_operand.hbm [shape: bf16[128,896], index: 1, kind: input, shape index: {}]
  %s2 = inlined_call_operand.vmem [shape: f32[1,896], index: 2, kind: input, shape index: {}]
  %s3 = inlined_call_operand.hbm [shape: f32[40,896], index: 3, kind: output, shape index: {}]
  %s4 = sld [smem:[#allocation0]]
  $region30: #{tpu_custom_call.1} parent=0
    _
  %s6 = ssub.s32 1, %s4
  %s7 = scalar_select 0, %s6, %s4
  $region1: #{tpu_custom_call.1} parent=0
    #allocation2 [shape = 'u8[10240]{0}', space=vmem, size = 0x2800, scoped, tag = 'input window, operand 0, single buffered']
    #allocation3 [shape = 's32[1]{0}', space=sflag, size = 0x4, scoped, tag = 'scoped memory for tpu_custom_call.1']
    #allocation4 [shape = 's32[1]{0}', space=sflag, size = 0x4, scoped, tag = 'scoped memory for tpu_custom_call.1']
    #allocation5 [shape = 'u8[229376]{0}', space=vmem, size = 0x38000, scoped, tag = 'input window, operand 1, single buffered']
    #allocation6 [shape = 's32[1]{0}', space=sflag, size = 0x4, scoped, tag = 'scoped memory for tpu_custom_call.1']
    #allocation7 [shape = 'u8[143360]{0}', space=vmem, size = 0x23000, scoped, tag = 'output window, operand 0, single buffered']
    %8 = vsyncpa [#allocation3], 0
    %9 = vsyncpa [#allocation6], 0
    %10 = vsyncpa [#allocation4], 0
    // Predicated region
    $region2: #{tpu_custom_call.1} parent=1 // pred_check
      _
    $region3: #{tpu_custom_call.1} parent=1 // pred_check_branch
      %12 = sbr.rel (0) target = $region5
    $region4: #{tpu_custom_call.1} parent=1 // pred_region
      %s14 = ssub.s32 320, 320
      %15 = vsyncadd [#allocation3], %s14
      %s16 = sshll.u32 [#allocation2], 4
      %s17 = int_to_ptr.vmem [resolvable:$true] %s16
      %22 = dma.hbm_to_vmem [thread:$0]  %s0, 320, %s17, [#allocation3], 64, 64, 4
    $region5: #{tpu_custom_call.1} parent=1 // pred_fallthru
      _
    // Predicated region
    $region6: #{tpu_custom_call.1} parent=1 // pred_check
      _
    $region7: #{tpu_custom_call.1} parent=1 // pred_check_branch
      %24 = sbr.rel (0) target = $region9
    $region8: #{tpu_custom_call.1} parent=1 // pred_region
      %s26 = ssub.s32 7168, 7168
      %27 = vsyncadd [#allocation6], %s26
      %s28 = sshll.u32 [#allocation5], 4
      %s29 = int_to_ptr.vmem [resolvable:$true] %s28
      %34 = dma.hbm_to_vmem [thread:$0]  %s1, 7168, %s29, [#allocation6], 448, 448, 28
    $region9: #{tpu_custom_call.1} parent=1 // pred_fallthru
      _
    // Predicated region
    $region10: #{tpu_custom_call.1} parent=1 // pred_check
      _
    $region11: #{tpu_custom_call.1} parent=1 // pred_check_branch
      %36 = sbr.rel (0) target = $region13
    $region12: #{tpu_custom_call.1} parent=1 // pred_region
      _
    $region13: #{tpu_custom_call.1} parent=1 // pred_fallthru
      _
    // Predicated region
    $region14: #{tpu_custom_call.1} parent=1 // pred_check
      _
    $region15: #{tpu_custom_call.1} parent=1 // pred_check_branch
      %38 = sbr.rel (0) target = $region17
    $region16: #{tpu_custom_call.1} parent=1 // pred_region
      %39 = dma.done [#allocation3], 320
    $region17: #{tpu_custom_call.1} parent=1 // pred_fallthru
      _
    // Predicated region
    $region18: #{tpu_custom_call.1} parent=1 // pred_check
      _
    $region19: #{tpu_custom_call.1} parent=1 // pred_check_branch
      %41 = sbr.rel (0) target = $region21
    $region20: #{tpu_custom_call.1} parent=1 // pred_region
      %42 = dma.done [#allocation6], 7168
    $region21: #{tpu_custom_call.1} parent=1 // pred_fallthru
      _
    %v44 = vld [vmem:[#allocation2] sm:$0xf]
    %v45 = vld [vmem:[#allocation2 + $0x4] sm:$0xf]
    %v46 = vld [vmem:[#allocation2 + $0x8] sm:$0xf]
    %v47 = vld [vmem:[#allocation2 + $0xc] sm:$0xf]
    %v48 = vld [vmem:[#allocation2 + $0x10] sm:$0xf]
    %v49 = vld [vmem:[#allocation5] sm:$0xff]
    %v50 = vld [vmem:[#allocation5 + $0x8] sm:$0xff]
    %v51 = vld [vmem:[#allocation5 + $0x10] sm:$0xff]
    %v52 = vld [vmem:[#allocation5 + $0x18] sm:$0xf]
    %v53 = vld [vmem:[#allocation5 + $0x1c] sm:$0xff]
    %v54 = vld [vmem:[#allocation5 + $0x24] sm:$0xff]
    %v55 = vld [vmem:[#allocation5 + $0x2c] sm:$0xff]
    %v56 = vld [vmem:[#allocation5 + $0x34] sm:$0xf]
    %v57 = vld [vmem:[#allocation5 + $0x38] sm:$0xff]
    %v58 = vld [vmem:[#allocation5 + $0x40] sm:$0xff]
    %v59 = vld [vmem:[#allocation5 + $0x48] sm:$0xff]
    %v60 = vld [vmem:[#allocation5 + $0x50] sm:$0xf]
    %v61 = vld [vmem:[#allocation5 + $0x54] sm:$0xff]
    %v62 = vld [vmem:[#allocation5 + $0x5c] sm:$0xff]
    %v63 = vld [vmem:[#allocation5 + $0x64] sm:$0xff]
    %v64 = vld [vmem:[#allocation5 + $0x6c] sm:$0xf]
    %v65 = vld [vmem:[#allocation5 + $0x70] sm:$0xff]
    %v66 = vld [vmem:[#allocation5 + $0x78] sm:$0xff]
    %v67 = vld [vmem:[#allocation5 + $0x80] sm:$0xff]
    %v68 = vld [vmem:[#allocation5 + $0x88] sm:$0xf]
    %v69 = vld [vmem:[#allocation5 + $0x8c] sm:$0xff]
    %v70 = vld [vmem:[#allocation5 + $0x94] sm:$0xff]
    %v71 = vld [vmem:[#allocation5 + $0x9c] sm:$0xff]
    %v72 = vld [vmem:[#allocation5 + $0xa4] sm:$0xf]
    %v73 = vld [vmem:[#allocation5 + $0xa8] sm:$0xff]
    %v74 = vld [vmem:[#allocation5 + $0xb0] sm:$0xff]
    %v75 = vld [vmem:[#allocation5 + $0xb8] sm:$0xff]
    %v76 = vld [vmem:[#allocation5 + $0xc0] sm:$0xf]
    %v77 = vld [vmem:[#allocation5 + $0xc4] sm:$0xff]
    %v78 = vld [vmem:[#allocation5 + $0xcc] sm:$0xff]
    %v79 = vld [vmem:[#allocation5 + $0xd4] sm:$0xff]
    %v80 = vld [vmem:[#allocation5 + $0xdc] sm:$0xf]
    %v81 = vld [vmem:[#allocation5 + $0xe0] sm:$0xff]
    %v82 = vld [vmem:[#allocation5 + $0xe8] sm:$0xff]
    %v83 = vld [vmem:[#allocation5 + $0xf0] sm:$0xff]
    %v84 = vld [vmem:[#allocation5 + $0xf8] sm:$0xf]
    %v85 = vld [vmem:[#allocation5 + $0xfc] sm:$0xff]
    %v86 = vld [vmem:[#allocation5 + $0x104] sm:$0xff]
    %v87 = vld [vmem:[#allocation5 + $0x10c] sm:$0xff]
    %v88 = vld [vmem:[#allocation5 + $0x114] sm:$0xf]
    %v89 = vld [vmem:[#allocation5 + $0x118] sm:$0xff]
    %v90 = vld [vmem:[#allocation5 + $0x120] sm:$0xff]
    %v91 = vld [vmem:[#allocation5 + $0x128] sm:$0xff]
    %v92 = vld [vmem:[#allocation5 + $0x130] sm:$0xf]
    %v93 = vld [vmem:[#allocation5 + $0x134] sm:$0xff]
    %v94 = vld [vmem:[#allocation5 + $0x13c] sm:$0xff]
    %v95 = vld [vmem:[#allocation5 + $0x144] sm:$0xff]
    %v96 = vld [vmem:[#allocation5 + $0x14c] sm:$0xf]
    %v97 = vld [vmem:[#allocation5 + $0x150] sm:$0xff]
    %v98 = vld [vmem:[#allocation5 + $0x158] sm:$0xff]
    %v99 = vld [vmem:[#allocation5 + $0x160] sm:$0xff]
    %v100 = vld [vmem:[#allocation5 + $0x168] sm:$0xf]
    %v101 = vld [vmem:[#allocation5 + $0x16c] sm:$0xff]
    %v102 = vld [vmem:[#allocation5 + $0x174] sm:$0xff]
    %v103 = vld [vmem:[#allocation5 + $0x17c] sm:$0xff]
    %v104 = vld [vmem:[#allocation5 + $0x184] sm:$0xf]
    %v105 = vld [vmem:[#allocation5 + $0x188] sm:$0xff]
    %v106 = vld [vmem:[#allocation5 + $0x190] sm:$0xff]
    %v107 = vld [vmem:[#allocation5 + $0x198] sm:$0xff]
    %v108 = vld [vmem:[#allocation5 + $0x1a0] sm:$0xf]
    %v109 = vld [vmem:[#allocation5 + $0x1a4] sm:$0xff]
    %v110 = vld [vmem:[#allocation5 + $0x1ac] sm:$0xff]
    %v111 = vld [vmem:[#allocation5 + $0x1b4] sm:$0xff]
    %v112 = vld [vmem:[#allocation5 + $0x1bc] sm:$0xf]
    %v113 = vld [vmem:[%s2] sm:$0xff]
    %v115 = vlaneseq
    %v116 = vshrl.u32 %v115, 7
    %v117 = vsub.s32 0, %v116
    %v118 = vrot.slane %v113, %v117
    %v119 = vlaneseq
    %v120 = vshrl.u32 %v119, 7
    %v121 = vsub.s32 1, %v120
    %v122 = vrot.slane %v113, %v121
    %v123 = vlaneseq
    %v124 = vshrl.u32 %v123, 7
    %v125 = vsub.s32 2, %v124
    %v126 = vrot.slane %v113, %v125
    %v127 = vlaneseq
    %v128 = vshrl.u32 %v127, 7
    %v129 = vsub.s32 3, %v128
    %v130 = vrot.slane %v113, %v129
    %v131 = vlaneseq
    %v132 = vshrl.u32 %v131, 7
    %v133 = vsub.s32 4, %v132
    %v134 = vrot.slane %v113, %v133
    %v135 = vlaneseq
    %v136 = vshrl.u32 %v135, 7
    %v137 = vsub.s32 5, %v136
    %v138 = vrot.slane %v113, %v137
    %v139 = vlaneseq
    %v140 = vshrl.u32 %v139, 7
    %v141 = vsub.s32 6, %v140
    %v142 = vrot.slane %v113, %v141
    %v155 = vunpack.c.l.b16 %v44
    %v156 = vunpack.c.l.b16 %v45
    %v157 = vunpack.c.l.b16 %v46
    %v158 = vunpack.c.l.b16 %v47
    %v159 = vunpack.c.l.b16 %v48
    %v160 = vpack.c.b16 %v156, %v155
    %v161 = vpack.c.b16 %v158, %v157
    %v162 = vpack.c.b16 %v159, %v159
    %v230 = vunpack.c.l.b16 %v49
    %v231 = vunpack.c.h.b16 %v49
    %v232 = vunpack.c.l.b16 %v50
    %v233 = vunpack.c.h.b16 %v50
    %v234 = vunpack.c.l.b16 %v51
    %v235 = vunpack.c.h.b16 %v51
    %v236 = vunpack.c.l.b16 %v52
    %v237 = vunpack.c.l.b16 %v53
    %v238 = vunpack.c.h.b16 %v53
    %v239 = vunpack.c.l.b16 %v54
    %v240 = vunpack.c.h.b16 %v54
    %v241 = vunpack.c.l.b16 %v55
    %v242 = vunpack.c.h.b16 %v55
    %v243 = vunpack.c.l.b16 %v56
    %v244 = vunpack.c.l.b16 %v57
    %v245 = vunpack.c.h.b16 %v57
    %v246 = vunpack.c.l.b16 %v58
    %v247 = vunpack.c.h.b16 %v58
    %v248 = vunpack.c.l.b16 %v59
    %v249 = vunpack.c.h.b16 %v59
    %v250 = vunpack.c.l.b16 %v60
    %v251 = vunpack.c.l.b16 %v61
    %v252 = vunpack.c.h.b16 %v61
    %v253 = vunpack.c.l.b16 %v62
    %v254 = vunpack.c.h.b16 %v62
    %v255 = vunpack.c.l.b16 %v63
    %v256 = vunpack.c.h.b16 %v63
    %v257 = vunpack.c.l.b16 %v64
    %v258 = vunpack.c.l.b16 %v65
    %v259 = vunpack.c.h.b16 %v65
    %v260 = vunpack.c.l.b16 %v66
    %v261 = vunpack.c.h.b16 %v66
    %v262 = vunpack.c.l.b16 %v67
    %v263 = vunpack.c.h.b16 %v67
    %v264 = vunpack.c.l.b16 %v68
    %v265 = vunpack.c.l.b16 %v69
    %v266 = vunpack.c.h.b16 %v69
    %v267 = vunpack.c.l.b16 %v70
    %v268 = vunpack.c.h.b16 %v70
    %v269 = vunpack.c.l.b16 %v71
    %v270 = vunpack.c.h.b16 %v71
    %v271 = vunpack.c.l.b16 %v72
    %v272 = vunpack.c.l.b16 %v73
    %v273 = vunpack.c.h.b16 %v73
    %v274 = vunpack.c.l.b16 %v74
    %v275 = vunpack.c.h.b16 %v74
    %v276 = vunpack.c.l.b16 %v75
    %v277 = vunpack.c.h.b16 %v75
    %v278 = vunpack.c.l.b16 %v76
    %v279 = vunpack.c.l.b16 %v77
    %v280 = vunpack.c.h.b16 %v77
    %v281 = vunpack.c.l.b16 %v78
    %v282 = vunpack.c.h.b16 %v78
    %v283 = vunpack.c.l.b16 %v79
    %v284 = vunpack.c.h.b16 %v79
    %v285 = vunpack.c.l.b16 %v80
    %v286 = vunpack.c.l.b16 %v81
    %v287 = vunpack.c.h.b16 %v81
    %v288 = vunpack.c.l.b16 %v82
    %v289 = vunpack.c.h.b16 %v82
    %v290 = vunpack.c.l.b16 %v83
    %v291 = vunpack.c.h.b16 %v83
    %v292 = vunpack.c.l.b16 %v84
    %v293 = vunpack.c.l.b16 %v85
    %v294 = vunpack.c.h.b16 %v85
    %v295 = vunpack.c.l.b16 %v86
    %v296 = vunpack.c.h.b16 %v86
    %v297 = vunpack.c.l.b16 %v87
    %v298 = vunpack.c.h.b16 %v87
    %v299 = vunpack.c.l.b16 %v88
    %v300 = vunpack.c.l.b16 %v89
    %v301 = vunpack.c.h.b16 %v89
    %v302 = vunpack.c.l.b16 %v90
    %v303 = vunpack.c.h.b16 %v90
    %v304 = vunpack.c.l.b16 %v91
    %v305 = vunpack.c.h.b16 %v91
    %v306 = vunpack.c.l.b16 %v92
    %v307 = vunpack.c.l.b16 %v93
    %v308 = vunpack.c.h.b16 %v93
    %v309 = vunpack.c.l.b16 %v94
    %v310 = vunpack.c.h.b16 %v94
    %v311 = vunpack.c.l.b16 %v95
    %v312 = vunpack.c.h.b16 %v95
    %v313 = vunpack.c.l.b16 %v96
    %v314 = vunpack.c.l.b16 %v97
    %v315 = vunpack.c.h.b16 %v97
    %v316 = vunpack.c.l.b16 %v98
    %v317 = vunpack.c.h.b16 %v98
    %v318 = vunpack.c.l.b16 %v99
    %v319 = vunpack.c.h.b16 %v99
    %v320 = vunpack.c.l.b16 %v100
    %v321 = vunpack.c.l.b16 %v101
    %v322 = vunpack.c.h.b16 %v101
    %v323 = vunpack.c.l.b16 %v102
    %v324 = vunpack.c.h.b16 %v102
    %v325 = vunpack.c.l.b16 %v103
    %v326 = vunpack.c.h.b16 %v103
    %v327 = vunpack.c.l.b16 %v104
    %v328 = vunpack.c.l.b16 %v105
    %v329 = vunpack.c.h.b16 %v105
    %v330 = vunpack.c.l.b16 %v106
    %v331 = vunpack.c.h.b16 %v106
    %v332 = vunpack.c.l.b16 %v107
    %v333 = vunpack.c.h.b16 %v107
    %v334 = vunpack.c.l.b16 %v108
    %v335 = vunpack.c.l.b16 %v109
    %v336 = vunpack.c.h.b16 %v109
    %v337 = vunpack.c.l.b16 %v110
    %v338 = vunpack.c.h.b16 %v110
    %v339 = vunpack.c.l.b16 %v111
    %v340 = vunpack.c.h.b16 %v111
    %v341 = vunpack.c.l.b16 %v112
    %v342 = vpack.c.b16 %v237, %v230
    %v343 = vpack.c.b16 %v238, %v231
    %v344 = vpack.c.b16 %v239, %v232
    %v345 = vpack.c.b16 %v240, %v233
    %v346 = vpack.c.b16 %v241, %v234
    %v347 = vpack.c.b16 %v242, %v235
    %v348 = vpack.c.b16 %v243, %v236
    %v349 = vpack.c.b16 %v251, %v244
    %v350 = vpack.c.b16 %v252, %v245
    %v351 = vpack.c.b16 %v253, %v246
    %v352 = vpack.c.b16 %v254, %v247
    %v353 = vpack.c.b16 %v255, %v248
    %v354 = vpack.c.b16 %v256, %v249
    %v355 = vpack.c.b16 %v257, %v250
    %v356 = vpack.c.b16 %v265, %v258
    %v357 = vpack.c.b16 %v266, %v259
    %v358 = vpack.c.b16 %v267, %v260
    %v359 = vpack.c.b16 %v268, %v261
    %v360 = vpack.c.b16 %v269, %v262
    %v361 = vpack.c.b16 %v270, %v263
    %v362 = vpack.c.b16 %v271, %v264
    %v363 = vpack.c.b16 %v279, %v272
    %v364 = vpack.c.b16 %v280, %v273
    %v365 = vpack.c.b16 %v281, %v274
    %v366 = vpack.c.b16 %v282, %v275
    %v367 = vpack.c.b16 %v283, %v276
    %v368 = vpack.c.b16 %v284, %v277
    %v369 = vpack.c.b16 %v285, %v278
    %v370 = vpack.c.b16 %v293, %v286
    %v371 = vpack.c.b16 %v294, %v287
    %v372 = vpack.c.b16 %v295, %v288
    %v373 = vpack.c.b16 %v296, %v289
    %v374 = vpack.c.b16 %v297, %v290
    %v375 = vpack.c.b16 %v298, %v291
    %v376 = vpack.c.b16 %v299, %v292
    %v377 = vpack.c.b16 %v307, %v300
    %v378 = vpack.c.b16 %v308, %v301
    %v379 = vpack.c.b16 %v309, %v302
    %v380 = vpack.c.b16 %v310, %v303
    %v381 = vpack.c.b16 %v311, %v304
    %v382 = vpack.c.b16 %v312, %v305
    %v383 = vpack.c.b16 %v313, %v306
    %v384 = vpack.c.b16 %v321, %v314
    %v385 = vpack.c.b16 %v322, %v315
    %v386 = vpack.c.b16 %v323, %v316
    %v387 = vpack.c.b16 %v324, %v317
    %v388 = vpack.c.b16 %v325, %v318
    %v389 = vpack.c.b16 %v326, %v319
    %v390 = vpack.c.b16 %v327, %v320
    %v391 = vpack.c.b16 %v335, %v328
    %v392 = vpack.c.b16 %v336, %v329
    %v393 = vpack.c.b16 %v337, %v330
    %v394 = vpack.c.b16 %v338, %v331
    %v395 = vpack.c.b16 %v339, %v332
    %v396 = vpack.c.b16 %v340, %v333
    %v397 = vpack.c.b16 %v341, %v334
    %454 = vmatprep.subr.bf16.mxu0 %v343
    %455 = vmatpush1.bf16.msra.mxu0 %v342
    %456 = vmatprep.subr.bf16.mxu0 %v350
    %457 = vmatpush1.bf16.msra.mxu0 %v349
    %458 = vmatprep.subr.bf16.mxu0 %v357
    %459 = vmatpush1.bf16.msra.mxu0 %v356
    %460 = vmatprep.subr.bf16.mxu0 %v364
    %461 = vmatpush1.bf16.msra.mxu0 %v363
    %462 = vmatprep.subr.bf16.mxu0 %v371
    %463 = vmatpush1.bf16.msra.mxu0 %v370
    %464 = vmatprep.subr.bf16.mxu0 %v378
    %465 = vmatpush1.bf16.msra.mxu0 %v377
    %466 = vmatprep.subr.bf16.mxu0 %v385
    %467 = vmatpush1.bf16.msra.mxu0 %v384
    %468 = vmatprep.subr.bf16.mxu0 %v392
    %469 = vmatpush1.bf16.msra.mxu0 %v391
    %470 = vmatprep.subr.bf16.mxu0 0
    %471 = vmatpush1.bf16.msra.mxu0 0
    %472 = vmatprep.subr.bf16.mxu0 0
    %473 = vmatpush1.bf16.msra.mxu0 0
    %474 = vmatprep.subr.bf16.mxu0 0
    %475 = vmatpush1.bf16.msra.mxu0 0
    %476 = vmatprep.subr.bf16.mxu0 0
    %477 = vmatpush1.bf16.msra.mxu0 0
    %478 = vmatprep.subr.bf16.mxu0 0
    %479 = vmatpush1.bf16.msra.mxu0 0
    %480 = vmatprep.subr.bf16.mxu0 0
    %481 = vmatpush1.bf16.msra.mxu0 0
    %482 = vmatprep.subr.bf16.mxu0 0
    %483 = vmatpush1.bf16.msra.mxu0 0
    %484 = vmatprep.subr.bf16.mxu0 0
    %485 = vmatpush1.bf16.msra.mxu0 0
    %486 = vmatprep.mubr.bf16.mxu0 0
    %487 = vmatmul.mubr.bf16.gmra.mrb[0].mxu0 %v160
    %v488 = vpop.f32.mrb[0].mxu0
    %v489 = vadd.f32 %v118, %v488
    %v490 = vpop.f32.mrb[0].mxu0
    %v491 = vadd.f32 %v122, %v490
    %v492 = vpop.f32.mrb[0].mxu0
    %v493 = vadd.f32 %v118, %v492
    %v494 = vpop.f32.mrb[0].mxu0
    %v495 = vadd.f32 %v122, %v494
    %496 = vmatprep.mubr.bf16.mxu0 0
    %497 = vmatmul.mubr.bf16.gmra.mrb[0].mxu0 %v161
    %v498 = vpop.f32.mrb[0].mxu0
    %v499 = vadd.f32 %v118, %v498
    %v500 = vpop.f32.mrb[0].mxu0
    %v501 = vadd.f32 %v122, %v500
    %v502 = vpop.f32.mrb[0].mxu0
    %v503 = vadd.f32 %v118, %v502
    %v504 = vpop.f32.mrb[0].mxu0
    %v505 = vadd.f32 %v122, %v504
    %506 = vmatprep.mubr.bf16.mxu0 0
    %507 = vmatmul.mubr.bf16.gmra.mrb[0].mxu0 %v162
    %v508 = vpop.f32.mrb[0].mxu0
    %v509 = vadd.f32 %v118, %v508
    %v510 = vpop.f32.mrb[0].mxu0
    %v511 = vadd.f32 %v122, %v510
    %v512 = vpop.f32.mrb[0].mxu0
    %v513 = vpop.f32.mrb[0].mxu0
    %514 = vdwg.mxu0
    %515 = vmatprep.subr.bf16.mxu0 %v345
    %516 = vmatpush1.bf16.msra.mxu0 %v344
    %517 = vmatprep.subr.bf16.mxu0 %v352
    %518 = vmatpush1.bf16.msra.mxu0 %v351
    %519 = vmatprep.subr.bf16.mxu0 %v359
    %520 = vmatpush1.bf16.msra.mxu0 %v358
    %521 = vmatprep.subr.bf16.mxu0 %v366
    %522 = vmatpush1.bf16.msra.mxu0 %v365
    %523 = vmatprep.subr.bf16.mxu0 %v373
    %524 = vmatpush1.bf16.msra.mxu0 %v372
    %525 = vmatprep.subr.bf16.mxu0 %v380
    %526 = vmatpush1.bf16.msra.mxu0 %v379
    %527 = vmatprep.subr.bf16.mxu0 %v387
    %528 = vmatpush1.bf16.msra.mxu0 %v386
    %529 = vmatprep.subr.bf16.mxu0 %v394
    %530 = vmatpush1.bf16.msra.mxu0 %v393
    %531 = vmatprep.subr.bf16.mxu0 0
    %532 = vmatpush1.bf16.msra.mxu0 0
    %533 = vmatprep.subr.bf16.mxu0 0
    %534 = vmatpush1.bf16.msra.mxu0 0
    %535 = vmatprep.subr.bf16.mxu0 0
    %536 = vmatpush1.bf16.msra.mxu0 0
    %537 = vmatprep.subr.bf16.mxu0 0
    %538 = vmatpush1.bf16.msra.mxu0 0
    %539 = vmatprep.subr.bf16.mxu0 0
    %540 = vmatpush1.bf16.msra.mxu0 0
    %541 = vmatprep.subr.bf16.mxu0 0
    %542 = vmatpush1.bf16.msra.mxu0 0
    %543 = vmatprep.subr.bf16.mxu0 0
    %544 = vmatpush1.bf16.msra.mxu0 0
    %545 = vmatprep.subr.bf16.mxu0 0
    %546 = vmatpush1.bf16.msra.mxu0 0
    %547 = vmatprep.mubr.bf16.mxu0 0
    %548 = vmatmul.mubr.bf16.gmra.mrb[0].mxu0 %v160
    %v549 = vpop.f32.mrb[0].mxu0
    %v550 = vadd.f32 %v126, %v549
    %v551 = vpop.f32.mrb[0].mxu0
    %v552 = vadd.f32 %v130, %v551
    %v553 = vpop.f32.mrb[0].mxu0
    %v554 = vadd.f32 %v126, %v553
    %v555 = vpop.f32.mrb[0].mxu0
    %v556 = vadd.f32 %v130, %v555
    %557 = vmatprep.mubr.bf16.mxu0 0
    %558 = vmatmul.mubr.bf16.gmra.mrb[0].mxu0 %v161
    %v559 = vpop.f32.mrb[0].mxu0
    %v560 = vadd.f32 %v126, %v559
    %v561 = vpop.f32.mrb[0].mxu0
    %v562 = vadd.f32 %v130, %v561
    %v563 = vpop.f32.mrb[0].mxu0
    %v564 = vadd.f32 %v126, %v563
    %v565 = vpop.f32.mrb[0].mxu0
    %v566 = vadd.f32 %v130, %v565
    %567 = vmatprep.mubr.bf16.mxu0 0
    %568 = vmatmul.mubr.bf16.gmra.mrb[0].mxu0 %v162
    %v569 = vpop.f32.mrb[0].mxu0
    %v570 = vadd.f32 %v126, %v569
    %v571 = vpop.f32.mrb[0].mxu0
    %v572 = vadd.f32 %v130, %v571
    %v573 = vpop.f32.mrb[0].mxu0
    %v574 = vpop.f32.mrb[0].mxu0
    %575 = vdwg.mxu0
    %576 = vmatprep.subr.bf16.mxu0 %v347
    %577 = vmatpush1.bf16.msra.mxu0 %v346
    %578 = vmatprep.subr.bf16.mxu0 %v354
    %579 = vmatpush1.bf16.msra.mxu0 %v353
    %580 = vmatprep.subr.bf16.mxu0 %v361
    %581 = vmatpush1.bf16.msra.mxu0 %v360
    %582 = vmatprep.subr.bf16.mxu0 %v368
    %583 = vmatpush1.bf16.msra.mxu0 %v367
    %584 = vmatprep.subr.bf16.mxu0 %v375
    %585 = vmatpush1.bf16.msra.mxu0 %v374
    %586 = vmatprep.subr.bf16.mxu0 %v382
    %587 = vmatpush1.bf16.msra.mxu0 %v381
    %588 = vmatprep.subr.bf16.mxu0 %v389
    %589 = vmatpush1.bf16.msra.mxu0 %v388
    %590 = vmatprep.subr.bf16.mxu0 %v396
    %591 = vmatpush1.bf16.msra.mxu0 %v395
    %592 = vmatprep.subr.bf16.mxu0 0
    %593 = vmatpush1.bf16.msra.mxu0 0
    %594 = vmatprep.subr.bf16.mxu0 0
    %595 = vmatpush1.bf16.msra.mxu0 0
    %596 = vmatprep.subr.bf16.mxu0 0
    %597 = vmatpush1.bf16.msra.mxu0 0
    %598 = vmatprep.subr.bf16.mxu0 0
    %599 = vmatpush1.bf16.msra.mxu0 0
    %600 = vmatprep.subr.bf16.mxu0 0
    %601 = vmatpush1.bf16.msra.mxu0 0
    %602 = vmatprep.subr.bf16.mxu0 0
    %603 = vmatpush1.bf16.msra.mxu0 0
    %604 = vmatprep.subr.bf16.mxu0 0
    %605 = vmatpush1.bf16.msra.mxu0 0
    %606 = vmatprep.subr.bf16.mxu0 0
    %607 = vmatpush1.bf16.msra.mxu0 0
    %608 = vmatprep.mubr.bf16.mxu0 0
    %609 = vmatmul.mubr.bf16.gmra.mrb[0].mxu0 %v160
    %v610 = vpop.f32.mrb[0].mxu0
    %v611 = vadd.f32 %v134, %v610
    %v612 = vpop.f32.mrb[0].mxu0
    %v613 = vadd.f32 %v138, %v612
    %v614 = vpop.f32.mrb[0].mxu0
    %v615 = vadd.f32 %v134, %v614
    %v616 = vpop.f32.mrb[0].mxu0
    %v617 = vadd.f32 %v138, %v616
    %618 = vmatprep.mubr.bf16.mxu0 0
    %619 = vmatmul.mubr.bf16.gmra.mrb[0].mxu0 %v161
    %v620 = vpop.f32.mrb[0].mxu0
    %v621 = vadd.f32 %v134, %v620
    %v622 = vpop.f32.mrb[0].mxu0
    %v623 = vadd.f32 %v138, %v622
    %v624 = vpop.f32.mrb[0].mxu0
    %v625 = vadd.f32 %v134, %v624
    %v626 = vpop.f32.mrb[0].mxu0
    %v627 = vadd.f32 %v138, %v626
    %628 = vmatprep.mubr.bf16.mxu0 0
    %629 = vmatmul.mubr.bf16.gmra.mrb[0].mxu0 %v162
    %v630 = vpop.f32.mrb[0].mxu0
    %v631 = vadd.f32 %v134, %v630
    %v632 = vpop.f32.mrb[0].mxu0
    %v633 = vadd.f32 %v138, %v632
    %v634 = vpop.f32.mrb[0].mxu0
    %v635 = vpop.f32.mrb[0].mxu0
    %636 = vdwg.mxu0
    %637 = vmatprep.subr.bf16.mxu0 0
    %638 = vmatpush1.bf16.msra.mxu0 %v348
    %639 = vmatprep.subr.bf16.mxu0 0
    %640 = vmatpush1.bf16.msra.mxu0 %v355
    %641 = vmatprep.subr.bf16.mxu0 0
    %642 = vmatpush1.bf16.msra.mxu0 %v362
    %643 = vmatprep.subr.bf16.mxu0 0
    %644 = vmatpush1.bf16.msra.mxu0 %v369
    %645 = vmatprep.subr.bf16.mxu0 0
    %646 = vmatpush1.bf16.msra.mxu0 %v376
    %647 = vmatprep.subr.bf16.mxu0 0
    %648 = vmatpush1.bf16.msra.mxu0 %v383
    %649 = vmatprep.subr.bf16.mxu0 0
    %650 = vmatpush1.bf16.msra.mxu0 %v390
    %651 = vmatprep.subr.bf16.mxu0 0
    %652 = vmatpush1.bf16.msra.mxu0 %v397
    %653 = vmatprep.subr.bf16.mxu0 0
    %654 = vmatpush1.bf16.msra.mxu0 0
    %655 = vmatprep.subr.bf16.mxu0 0
    %656 = vmatpush1.bf16.msra.mxu0 0
    %657 = vmatprep.subr.bf16.mxu0 0
    %658 = vmatpush1.bf16.msra.mxu0 0
    %659 = vmatprep.subr.bf16.mxu0 0
    %660 = vmatpush1.bf16.msra.mxu0 0
    %661 = vmatprep.subr.bf16.mxu0 0
    %662 = vmatpush1.bf16.msra.mxu0 0
    %663 = vmatprep.subr.bf16.mxu0 0
    %664 = vmatpush1.bf16.msra.mxu0 0
    %665 = vmatprep.subr.bf16.mxu0 0
    %666 = vmatpush1.bf16.msra.mxu0 0
    %667 = vmatprep.subr.bf16.mxu0 0
    %668 = vmatpush1.bf16.msra.mxu0 0
    %669 = vmatprep.mubr.bf16.mxu0 0
    %670 = vmatmul.mubr.bf16.gmra.mrb[0].mxu0 %v160
    %v671 = vpop.f32.mrb[0].mxu0
    %v672 = vadd.f32 %v142, %v671
    %v673 = vpop.f32.mrb[0].mxu0
    %v674 = vpop.f32.mrb[0].mxu0
    %v675 = vadd.f32 %v142, %v674
    %v676 = vpop.f32.mrb[0].mxu0
    %677 = vmatprep.mubr.bf16.mxu0 0
    %678 = vmatmul.mubr.bf16.gmra.mrb[0].mxu0 %v161
    %v679 = vpop.f32.mrb[0].mxu0
    %v680 = vadd.f32 %v142, %v679
    %v681 = vpop.f32.mrb[0].mxu0
    %v682 = vpop.f32.mrb[0].mxu0
    %v683 = vadd.f32 %v142, %v682
    %v684 = vpop.f32.mrb[0].mxu0
    %685 = vmatprep.mubr.bf16.mxu0 0
    %686 = vmatmul.mubr.bf16.gmra.mrb[0].mxu0 %v162
    %v687 = vpop.f32.mrb[0].mxu0
    %v688 = vadd.f32 %v142, %v687
    %v689 = vpop.f32.mrb[0].mxu0
    %v690 = vpop.f32.mrb[0].mxu0
    %v691 = vpop.f32.mrb[0].mxu0
    %692 = vdwg.mxu0
    %693 = vst [vmem:[#allocation7] sm:$0xff] %v489
    %694 = vst [vmem:[#allocation7 + $0x8] sm:$0xff] %v491
    %695 = vst [vmem:[#allocation7 + $0x10] sm:$0xff] %v550
    %696 = vst [vmem:[#allocation7 + $0x18] sm:$0xff] %v552
    %697 = vst [vmem:[#allocation7 + $0x20] sm:$0xff] %v611
    %698 = vst [vmem:[#allocation7 + $0x28] sm:$0xff] %v613
    %699 = vst [vmem:[#allocation7 + $0x30] sm:$0xff] %v672
    %700 = vst [vmem:[#allocation7 + $0x38] sm:$0xff] %v493
    %701 = vst [vmem:[#allocation7 + $0x40] sm:$0xff] %v495
    %702 = vst [vmem:[#allocation7 + $0x48] sm:$0xff] %v554
    %703 = vst [vmem:[#allocation7 + $0x50] sm:$0xff] %v556
    %704 = vst [vmem:[#allocation7 + $0x58] sm:$0xff] %v615
    %705 = vst [vmem:[#allocation7 + $0x60] sm:$0xff] %v617
    %706 = vst [vmem:[#allocation7 + $0x68] sm:$0xff] %v675
    %707 = vst [vmem:[#allocation7 + $0x70] sm:$0xff] %v499
    %708 = vst [vmem:[#allocation7 + $0x78] sm:$0xff] %v501
    %709 = vst [vmem:[#allocation7 + $0x80] sm:$0xff] %v560
    %710 = vst [vmem:[#allocation7 + $0x88] sm:$0xff] %v562
    %711 = vst [vmem:[#allocation7 + $0x90] sm:$0xff] %v621
    %712 = vst [vmem:[#allocation7 + $0x98] sm:$0xff] %v623
    %713 = vst [vmem:[#allocation7 + $0xa0] sm:$0xff] %v680
    %714 = vst [vmem:[#allocation7 + $0xa8] sm:$0xff] %v503
    %715 = vst [vmem:[#allocation7 + $0xb0] sm:$0xff] %v505
    %716 = vst [vmem:[#allocation7 + $0xb8] sm:$0xff] %v564
    %717 = vst [vmem:[#allocation7 + $0xc0] sm:$0xff] %v566
    %718 = vst [vmem:[#allocation7 + $0xc8] sm:$0xff] %v625
    %719 = vst [vmem:[#allocation7 + $0xd0] sm:$0xff] %v627
    %720 = vst [vmem:[#allocation7 + $0xd8] sm:$0xff] %v683
    %721 = vst [vmem:[#allocation7 + $0xe0] sm:$0xff] %v509
    %722 = vst [vmem:[#allocation7 + $0xe8] sm:$0xff] %v511
    %723 = vst [vmem:[#allocation7 + $0xf0] sm:$0xff] %v570
    %724 = vst [vmem:[#allocation7 + $0xf8] sm:$0xff] %v572
    %725 = vst [vmem:[#allocation7 + $0x100] sm:$0xff] %v631
    %726 = vst [vmem:[#allocation7 + $0x108] sm:$0xff] %v633
    %727 = vst [vmem:[#allocation7 + $0x110] sm:$0xff] %v688
    // Predicated region
    $region22: #{tpu_custom_call.1} parent=1 // pred_check
      _
    $region23: #{tpu_custom_call.1} parent=1 // pred_check_branch
      %729 = sbr.rel (0) target = $region25
    $region24: #{tpu_custom_call.1} parent=1 // pred_region
      %s731 = ssub.s32 4480, 4480
      %732 = vsyncadd [#allocation4], %s731
      %s733 = sshll.u32 [#allocation7], 4
      %s734 = int_to_ptr.vmem [resolvable:$true] %s733
      %739 = dma.vmem_to_hbm [thread:$0]  %s734, 4480, %s3, [#allocation4], 896, 896, 56
    $region25: #{tpu_custom_call.1} parent=1 // pred_fallthru
      _
    // Predicated region
    $region26: #{tpu_custom_call.1} parent=1 // pred_check
      _
    $region27: #{tpu_custom_call.1} parent=1 // pred_check_branch
      %741 = sbr.rel (0) target = $region29
    $region28: #{tpu_custom_call.1} parent=1 // pred_region
      %742 = dma.done [#allocation4], 4480
    $region29: #{tpu_custom_call.1} parent=1 // pred_fallthru
      _
    %743 = vsyncpa [#allocation3], 1
    %744 = vsyncpa [#allocation6], 1
    %745 = vsyncpa [#allocation4], 1

</llo_original>
